<compile_context>
chip_gen: v7x
topology: tpu7x:2x2x1
jax: 0.10.0
libtpu: 0.0.40
codegen_flags: <defaults>
</compile_context>

<pallas_src>
import math
import functools
import jax
import jax.numpy as jnp
from jax import lax
from jax.experimental import pallas as pl
from jax.experimental.pallas import tpu as pltpu


def _round_up(n, m):
    return ((n + m - 1) // m) * m


def transformer_layer_kernel(x_ref, q_ref, kT_ref, v_ref,
                             w1_ref, b1_ref, w2_ref, b2_ref,
                             out_ref, attn_ref, *, compute_dtype):
    cd = compute_dtype
    x_t = x_ref[...]                                            # [TQ, Dm_p] f32 (residual)

    # scores = (Q/sqrt(Di)) @ K^T  (scale folded into wq/bq; K pre-transposed in the wrapper).
    scores = jnp.dot(q_ref[...], kT_ref[...],
                     preferred_element_type=jnp.float32)        # [TQ, S]

    # Numerically-stable softmax; EUP approx reciprocal + one Newton step (~f32 exact).
    m = jnp.max(scores, axis=-1, keepdims=True)
    e = jnp.exp(scores - m)
    denom = jnp.sum(e, axis=-1, keepdims=True)
    r = pl.reciprocal(denom, approx=True)
    r = r * (2.0 - denom * r)                                   # Newton-Raphson refinement
    attn = e * r                                                # [TQ, S] f32

    # P kept in f32, V resident in f32 -> accurate attn @ V on every dtype path.
    a = jnp.dot(attn, v_ref[...], preferred_element_type=jnp.float32)   # [TQ, Dm_p]
    z = a + x_t                                                 # residual 1 (f32)

    # Feed-forward: w2(GELU(w1(z))), exact erf-based GELU (torch nn.GELU default).
    h = jnp.dot(z.astype(cd), w1_ref[...],
                preferred_element_type=jnp.float32) + b1_ref[...]        # [TQ, Di_p]
    g = 0.5 * h * (1.0 + lax.erf(h * (1.0 / math.sqrt(2.0))))
    ff = jnp.dot(g.astype(cd), w2_ref[...],
                 preferred_element_type=jnp.float32) + b2_ref[...]       # [TQ, Dm_p]

    out_ref[...] = (ff + z).astype(out_ref.dtype)               # residual 2
    attn_ref[...] = attn.astype(attn_ref.dtype)


def transformer_layer(x, params, d_internal, *, tq=128,
                      compute_dtype=jnp.float32, attn_dtype=jnp.float32):
    """x: [S, d_model] f32. params: pre-transposed weights [in,out], biases [1,out] (f32)."""
    S, Dm = x.shape
    Di = d_internal
    tq = min(tq, S)
    assert S % tq == 0, "seq length must be a multiple of the query tile"
    assert tq % 8 == 0 or tq == S, "query tile must be sublane-aligned"
    grid = (S // tq,)

    LANE = 128
    Dm_p = _round_up(Dm, LANE)
    Di_p = _round_up(Di, LANE)

    # ---- Prologue (plain XLA, runs once): fused QKV projection over the full sequence.
    scale = 1.0 / math.sqrt(Di)
    w_qkv = jnp.concatenate([params["wq"] * scale, params["wk"], params["wv"]], axis=1)
    b_qkv = jnp.concatenate([params["bq"] * scale, params["bk"], params["bv"]], axis=1)
    qkv = x @ w_qkv + b_qkv                                     # [S, 2*Di + Dm] f32
    q, k, v = qkv[:, :Di], qkv[:, Di:2 * Di], qkv[:, 2 * Di:]

    # Zero-pad to lane-dense widths; padded columns stay exactly zero through the whole layer.
    x_p = jnp.pad(x, ((0, 0), (0, Dm_p - Dm)))                          # f32 (residual)
    q_p = jnp.pad(q, ((0, 0), (0, Di_p - Di))).astype(compute_dtype)    # [S, Di_p]
    kT_p = jnp.pad(k, ((0, 0), (0, Di_p - Di))).T.astype(compute_dtype)  # [Di_p, S]
    v_p = jnp.pad(v, ((0, 0), (0, Dm_p - Dm)))                          # [S, Dm_p] f32
    w1_p = jnp.pad(params["w1"], ((0, Dm_p - Dm), (0, Di_p - Di))).astype(compute_dtype)
    b1_p = jnp.pad(params["b1"], ((0, 0), (0, Di_p - Di)))
    w2_p = jnp.pad(params["w2"], ((0, Di_p - Di), (0, Dm_p - Dm))).astype(compute_dtype)
    b2_p = jnp.pad(params["b2"], ((0, 0), (0, Dm_p - Dm)))

    cd_b = jnp.dtype(compute_dtype).itemsize
    at_b = jnp.dtype(attn_dtype).itemsize

    # VMEM budget: resident buffers (x2 for pipelining conservatism) + double-buffered tiles.
    resident = (Di_p * S * cd_b + S * Dm_p * 4
                + Dm_p * Di_p * cd_b + Di_p * Dm_p * cd_b + (Di_p + Dm_p) * 4)
    streamed = 2 * (tq * Dm_p * 4 + tq * Di_p * cd_b + tq * Dm_p * 4 + tq * S * at_b)
    vmem_limit = int(min(max(2 * resident + streamed + (8 << 20), 32 << 20), 100 << 20))

    flops = 2 * S * S * Di_p + 2 * S * S * Dm_p + 2 * S * Dm_p * Di_p + 2 * S * Di_p * Dm_p
    bytes_accessed = ((x_p.size + v_p.size + b1_p.size + b2_p.size) * 4
                      + (q_p.size + kT_p.size + w1_p.size + w2_p.size) * cd_b
                      + S * Dm_p * 4 + S * S * at_b)
    cost = pl.CostEstimate(flops=flops, transcendentals=S * S + S * Di_p,
                           bytes_accessed=bytes_accessed)

    kernel = functools.partial(transformer_layer_kernel, compute_dtype=compute_dtype)

    const = lambda i: (0, 0)          # resident blocks (K^T, V, FFN weights/biases)
    tiled = lambda i: (i, 0)          # streamed query-row tiles

    out_p, attn = pl.pallas_call(
        kernel,
        grid=grid,
        in_specs=[
            pl.BlockSpec((tq, Dm_p), tiled),      # x tile (f32, residual path)
            pl.BlockSpec((tq, Di_p), tiled),      # q tile (scale folded, compute dtype)
            pl.BlockSpec((Di_p, S), const),       # K^T resident
            pl.BlockSpec((S, Dm_p), const),       # V resident (f32)
            pl.BlockSpec((Dm_p, Di_p), const),    # w1
            pl.BlockSpec((1, Di_p), const),       # b1
            pl.BlockSpec((Di_p, Dm_p), const),    # w2
            pl.BlockSpec((1, Dm_p), const),       # b2
        ],
        out_specs=(
            pl.BlockSpec((tq, Dm_p), tiled),      # output rows (lane-dense)
            pl.BlockSpec((tq, S), tiled),         # attention rows
        ),
        out_shape=(jax.ShapeDtypeStruct((S, Dm_p), jnp.float32),
                   jax.ShapeDtypeStruct((S, S), attn_dtype)),
        compiler_params=pltpu.CompilerParams(
            dimension_semantics=("parallel",),
            vmem_limit_bytes=vmem_limit),
        cost_estimate=cost,
    )(x_p, q_p, kT_p, v_p, w1_p, b1_p, w2_p, b2_p)

    return out_p[:, :Dm], attn


def xavier_uniform(key, fan_in, fan_out):
    bound = math.sqrt(6.0 / (fan_in + fan_out))
    # returned in [in, out] layout (already transposed vs torch's [out, in])
    return jax.random.uniform(key, (fan_in, fan_out), jnp.float32, -bound, bound)


def make_params(key, d_model, d_internal):
    ks = jax.random.split(key, 10)
    return {
        "wq": xavier_uniform(ks[0], d_model, d_internal),
        "bq": jax.random.uniform(ks[1], (1, d_internal), jnp.float32, -0.1, 0.1),
        "wk": xavier_uniform(ks[2], d_model, d_internal),
        "bk": jax.random.uniform(ks[3], (1, d_internal), jnp.float32, -0.1, 0.1),
        "wv": xavier_uniform(ks[4], d_model, d_model),
        "bv": jax.random.uniform(ks[5], (1, d_model), jnp.float32, -0.1, 0.1),
        "w1": xavier_uniform(ks[6], d_model, d_internal),
        "b1": jax.random.uniform(ks[7], (1, d_internal), jnp.float32, -0.1, 0.1),
        "w2": xavier_uniform(ks[8], d_internal, d_model),
        "b2": jax.random.uniform(ks[9], (1, d_model), jnp.float32, -0.1, 0.1),
    }


def reference(x, p, d_internal):
    q = x @ p["wq"] + p["bq"]
    k = x @ p["wk"] + p["bk"]
    v = x @ p["wv"] + p["bv"]
    s = (q @ k.T) / math.sqrt(d_internal)
    attn = jax.nn.softmax(s, axis=-1)
    z = attn @ v + x
    h = z @ p["w1"] + p["b1"]
    g = 0.5 * h * (1.0 + lax.erf(h / math.sqrt(2.0)))
    out = g @ p["w2"] + p["b2"] + z
    return out, attn


if __name__ == "__main__":
    seq, d_model, d_internal = 16, 32, 16   # 2 query tiles -> exercises the parallel grid axis
    key = jax.random.PRNGKey(0)
    kx, kp = jax.random.split(key)
    x = jax.random.normal(kx, (seq, d_model), jnp.float32)
    params = make_params(kp, d_model, d_internal)

    out_ref, attn_ref = reference(x, params, d_internal)

    # f32 MXU operands: matches torch semantics to tight tolerance.
    out, attn = transformer_layer(x, params, d_internal, tq=8,
                                  compute_dtype=jnp.float32, attn_dtype=jnp.float32)
    jax.block_until_ready((out, attn))
    assert out.shape == (seq, d_model) and attn.shape == (seq, seq)
    assert jnp.allclose(out, out_ref, atol=1e-4, rtol=1e-4), "output mismatch (f32)"
    assert jnp.allclose(attn, attn_ref, atol=1e-5, rtol=1e-5), "attention mismatch (f32)"

    # bf16 MXU operands / f32 accumulate, bf16 attention writeback (v6e/v7x fast path).
    out_bf, attn_bf = transformer_layer(x, params, d_internal, tq=8,
                                        compute_dtype=jnp.bfloat16, attn_dtype=jnp.bfloat16)
    jax.block_until_ready((out_bf, attn_bf))
    assert jnp.allclose(out_bf, out_ref, atol=1e-1, rtol=5e-2), "output mismatch (bf16)"
    assert jnp.allclose(attn_bf.astype(jnp.float32), attn_ref,
                        atol=5e-2, rtol=5e-2), "attention mismatch (bf16)"

    print("KERNEL_OK")
</pallas_src>

<mosaic_0001>
module attributes {stable_mosaic.version = 11 : i64} {
  func.func @transformer_layer_kernel(%arg0: i32, %arg1: memref<8x128xf32, #tpu.memory_space<vmem>>, %arg2: memref<8x128xf32, #tpu.memory_space<vmem>>, %arg3: memref<128x16xf32, #tpu.memory_space<vmem>>, %arg4: memref<16x128xf32, #tpu.memory_space<vmem>>, %arg5: memref<128x128xf32, #tpu.memory_space<vmem>>, %arg6: memref<1x128xf32, #tpu.memory_space<vmem>>, %arg7: memref<128x128xf32, #tpu.memory_space<vmem>>, %arg8: memref<1x128xf32, #tpu.memory_space<vmem>>, %arg9: memref<8x128xf32, #tpu.memory_space<vmem>>, %arg10: memref<8x16xf32, #tpu.memory_space<vmem>>) attributes {dimension_semantics = [#tpu.dimension_semantics<parallel>], iteration_bounds = array<i64: 2>, scalar_prefetch = 0 : i64, scratch_operands = 0 : i64, tpu.core_type = #tpu.core_type<tc>, window_params = [{transform_indices = @transform_0, window_bounds = array<i64: 8, 128>}, {transform_indices = @transform_1, window_bounds = array<i64: 8, 128>}, {pipeline_mode = #tpu.pipeline_mode<synchronous>, transform_indices = @transform_2, window_bounds = array<i64: 128, 16>}, {pipeline_mode = #tpu.pipeline_mode<synchronous>, transform_indices = @transform_3, window_bounds = array<i64: 16, 128>}, {pipeline_mode = #tpu.pipeline_mode<synchronous>, transform_indices = @transform_4, window_bounds = array<i64: 128, 128>}, {pipeline_mode = #tpu.pipeline_mode<synchronous>, transform_indices = @transform_5, window_bounds = array<i64: 1, 128>}, {pipeline_mode = #tpu.pipeline_mode<synchronous>, transform_indices = @transform_6, window_bounds = array<i64: 128, 128>}, {pipeline_mode = #tpu.pipeline_mode<synchronous>, transform_indices = @transform_7, window_bounds = array<i64: 1, 128>}, {transform_indices = @transform_8, window_bounds = array<i64: 8, 128>}, {transform_indices = @transform_9, window_bounds = array<i64: 8, 16>}]} {
    %c0 = arith.constant 0 : index
    %c0_0 = arith.constant 0 : index
    %0 = vector.load %arg1[%c0, %c0_0] : memref<8x128xf32, #tpu.memory_space<vmem>>, vector<8x128xf32>
    %c0_1 = arith.constant 0 : index
    %c0_2 = arith.constant 0 : index
    %1 = vector.load %arg2[%c0_1, %c0_2] : memref<8x128xf32, #tpu.memory_space<vmem>>, vector<8x128xf32>
    %c0_3 = arith.constant 0 : index
    %c0_4 = arith.constant 0 : index
    %2 = vector.load %arg3[%c0_3, %c0_4] : memref<128x16xf32, #tpu.memory_space<vmem>>, vector<128x16xf32>
    %cst = arith.constant dense<0.000000e+00> : vector<8x16xf32>
    %3 = tpu.matmul %1, %2, %cst {dimension_numbers = #tpu.dot_dimension_numbers<[1], [0], [0], [1], [0, 0, 1, 1], [], []>} : vector<8x128xf32>, vector<128x16xf32>, vector<8x16xf32> -> vector<8x16xf32>
    %cst_5 = arith.constant dense<0xFF800000> : vector<8xf32>
    %4 = vector.multi_reduction <maximumf>, %3, %cst_5 [1] : vector<8x16xf32> to vector<8xf32>
    %5 = vector.shape_cast %4 : vector<8xf32> to vector<8x1xf32>
    %6 = vector.broadcast %5 : vector<8x1xf32> to vector<8x16xf32>
    %7 = arith.subf %3, %6 : vector<8x16xf32>
    %8 = math.exp %7 : vector<8x16xf32>
    %cst_6 = arith.constant dense<0.000000e+00> : vector<8xf32>
    %9 = vector.multi_reduction <add>, %8, %cst_6 [1] : vector<8x16xf32> to vector<8xf32>
    %10 = vector.shape_cast %9 : vector<8xf32> to vector<8x1xf32>
    %11 = tpu.reciprocal %10 {approx = true} : vector<8x1xf32> -> vector<8x1xf32>
    %12 = arith.mulf %10, %11 : vector<8x1xf32>
    %cst_7 = arith.constant 2.000000e+00 : f32
    %13 = vector.broadcast %cst_7 : f32 to vector<8x1xf32>
    %14 = arith.subf %13, %12 : vector<8x1xf32>
    %15 = arith.mulf %11, %14 : vector<8x1xf32>
    %16 = vector.broadcast %15 : vector<8x1xf32> to vector<8x16xf32>
    %17 = arith.mulf %8, %16 : vector<8x16xf32>
    %c0_8 = arith.constant 0 : index
    %c0_9 = arith.constant 0 : index
    %18 = vector.load %arg4[%c0_8, %c0_9] : memref<16x128xf32, #tpu.memory_space<vmem>>, vector<16x128xf32>
    %cst_10 = arith.constant dense<0.000000e+00> : vector<8x128xf32>
    %19 = tpu.matmul %17, %18, %cst_10 {dimension_numbers = #tpu.dot_dimension_numbers<[1], [0], [0], [1], [0, 0, 1, 1], [], []>} : vector<8x16xf32>, vector<16x128xf32>, vector<8x128xf32> -> vector<8x128xf32>
    %20 = arith.addf %19, %0 : vector<8x128xf32>
    %c0_11 = arith.constant 0 : index
    %c0_12 = arith.constant 0 : index
    %21 = vector.load %arg5[%c0_11, %c0_12] : memref<128x128xf32, #tpu.memory_space<vmem>>, vector<128x128xf32>
    %cst_13 = arith.constant dense<0.000000e+00> : vector<8x128xf32>
    %22 = tpu.matmul %20, %21, %cst_13 {dimension_numbers = #tpu.dot_dimension_numbers<[1], [0], [0], [1], [0, 0, 1, 1], [], []>} : vector<8x128xf32>, vector<128x128xf32>, vector<8x128xf32> -> vector<8x128xf32>
    %c0_14 = arith.constant 0 : index
    %c0_15 = arith.constant 0 : index
    %23 = vector.load %arg6[%c0_14, %c0_15] : memref<1x128xf32, #tpu.memory_space<vmem>>, vector<1x128xf32>
    %24 = vector.broadcast %23 : vector<1x128xf32> to vector<8x128xf32>
    %25 = arith.addf %22, %24 : vector<8x128xf32>
    %cst_16 = arith.constant 5.000000e-01 : f32
    %26 = vector.broadcast %cst_16 : f32 to vector<8x128xf32>
    %27 = arith.mulf %26, %25 : vector<8x128xf32>
    %cst_17 = arith.constant 0.707106769 : f32
    %28 = vector.broadcast %cst_17 : f32 to vector<8x128xf32>
    %29 = arith.mulf %25, %28 : vector<8x128xf32>
    %30 = math.erf %29 : vector<8x128xf32>
    %cst_18 = arith.constant 1.000000e+00 : f32
    %31 = vector.broadcast %cst_18 : f32 to vector<8x128xf32>
    %32 = arith.addf %31, %30 : vector<8x128xf32>
    %33 = arith.mulf %27, %32 : vector<8x128xf32>
    %c0_19 = arith.constant 0 : index
    %c0_20 = arith.constant 0 : index
    %34 = vector.load %arg7[%c0_19, %c0_20] : memref<128x128xf32, #tpu.memory_space<vmem>>, vector<128x128xf32>
    %cst_21 = arith.constant dense<0.000000e+00> : vector<8x128xf32>
    %35 = tpu.matmul %33, %34, %cst_21 {dimension_numbers = #tpu.dot_dimension_numbers<[1], [0], [0], [1], [0, 0, 1, 1], [], []>} : vector<8x128xf32>, vector<128x128xf32>, vector<8x128xf32> -> vector<8x128xf32>
    %c0_22 = arith.constant 0 : index
    %c0_23 = arith.constant 0 : index
    %36 = vector.load %arg8[%c0_22, %c0_23] : memref<1x128xf32, #tpu.memory_space<vmem>>, vector<1x128xf32>
    %37 = vector.broadcast %36 : vector<1x128xf32> to vector<8x128xf32>
    %38 = arith.addf %35, %37 : vector<8x128xf32>
    %39 = arith.addf %38, %20 : vector<8x128xf32>
    %c0_24 = arith.constant 0 : index
    %c0_25 = arith.constant 0 : index
    %40 = vector.load %arg9[%c0_24, %c0_25] : memref<8x128xf32, #tpu.memory_space<vmem>>, vector<8x128xf32>
    tpu.vector_store %arg9[%c0_24, %c0_25], %39 {strides = array<i32>} : memref<8x128xf32, #tpu.memory_space<vmem>>, vector<8x128xf32>,
    %c0_26 = arith.constant 0 : index
    %c0_27 = arith.constant 0 : index
    %41 = vector.load %arg10[%c0_26, %c0_27] : memref<8x16xf32, #tpu.memory_space<vmem>>, vector<8x16xf32>
    tpu.vector_store %arg10[%c0_26, %c0_27], %17 {strides = array<i32>} : memref<8x16xf32, #tpu.memory_space<vmem>>, vector<8x16xf32>,
    return
  }
  func.func @transform_0(%arg0: i32) -> (i32, i32) {
    %c0_i32 = arith.constant 0 : i32
    %c0_i32_0 = arith.constant 0 : i32
    return %arg0, %c0_i32 : i32, i32
  }
  func.func @transform_1(%arg0: i32) -> (i32, i32) {
    %c0_i32 = arith.constant 0 : i32
    %c0_i32_0 = arith.constant 0 : i32
    return %arg0, %c0_i32 : i32, i32
  }
  func.func @transform_2(%arg0: i32) -> (i32, i32) {
    %c0_i32 = arith.constant 0 : i32
    %c0_i32_0 = arith.constant 0 : i32
    %c0_i32_1 = arith.constant 0 : i32
    return %c0_i32, %c0_i32_0 : i32, i32
  }
  func.func @transform_3(%arg0: i32) -> (i32, i32) {
    %c0_i32 = arith.constant 0 : i32
    %c0_i32_0 = arith.constant 0 : i32
    %c0_i32_1 = arith.constant 0 : i32
    return %c0_i32, %c0_i32_0 : i32, i32
  }
  func.func @transform_4(%arg0: i32) -> (i32, i32) {
    %c0_i32 = arith.constant 0 : i32
    %c0_i32_0 = arith.constant 0 : i32
    %c0_i32_1 = arith.constant 0 : i32
    return %c0_i32, %c0_i32_0 : i32, i32
  }
  func.func @transform_5(%arg0: i32) -> (i32, i32) {
    %c0_i32 = arith.constant 0 : i32
    %c0_i32_0 = arith.constant 0 : i32
    %c0_i32_1 = arith.constant 0 : i32
    return %c0_i32, %c0_i32_0 : i32, i32
  }
  func.func @transform_6(%arg0: i32) -> (i32, i32) {
    %c0_i32 = arith.constant 0 : i32
    %c0_i32_0 = arith.constant 0 : i32
    %c0_i32_1 = arith.constant 0 : i32
    return %c0_i32, %c0_i32_0 : i32, i32
  }
  func.func @transform_7(%arg0: i32) -> (i32, i32) {
    %c0_i32 = arith.constant 0 : i32
    %c0_i32_0 = arith.constant 0 : i32
    %c0_i32_1 = arith.constant 0 : i32
    return %c0_i32, %c0_i32_0 : i32, i32
  }
  func.func @transform_8(%arg0: i32) -> (i32, i32) {
    %c0_i32 = arith.constant 0 : i32
    %c0_i32_0 = arith.constant 0 : i32
    return %arg0, %c0_i32 : i32, i32
  }
  func.func @transform_9(%arg0: i32) -> (i32, i32) {
    %c0_i32 = arith.constant 0 : i32
    %c0_i32_0 = arith.constant 0 : i32
    return %arg0, %c0_i32 : i32, i32
  }
}

</mosaic_0001>

<llo_original>
// kernel: tpu_custom_call.1
$region0: #{tpu_custom_call.1}
  #allocation0 [shape = 'u32[]', space=smem, size = 0x4, offset = 0x4, fixed_abs, tag = 'smem constant byte address 0x4 - core index']
  #allocation1 [shape = 'u32[144,128]{1,0:T(1,128)}', space=vmem, size = 0x12000, scoped, tag = 'internal scratch']
  %s0 = inlined_call_operand.vmem [shape: f32[16,128], index: 0, kind: input, shape index: {}]
  %s1 = inlined_call_operand.hbm [shape: f32[16,128], index: 1, kind: input, shape index: {}]
  %s2 = inlined_call_operand.vmem [shape: f32[128,16], index: 2, kind: input, shape index: {}]
  %s3 = inlined_call_operand.hbm [shape: f32[16,128], index: 3, kind: input, shape index: {}]
  %s4 = inlined_call_operand.vmem [shape: f32[128,128], index: 4, kind: input, shape index: {}]
  %s5 = inlined_call_operand.vmem [shape: f32[1,128], index: 5, kind: input, shape index: {}]
  %s6 = inlined_call_operand.hbm [shape: f32[128,128], index: 6, kind: input, shape index: {}]
  %s7 = inlined_call_operand.vmem [shape: f32[1,128], index: 7, kind: input, shape index: {}]
  %s8 = inlined_call_operand.hbm [shape: f32[16,128], index: 8, kind: output, shape index: {0}]
  %s9 = inlined_call_operand.hbm [shape: f32[16,16], index: 9, kind: output, shape index: {1}]
  %10 = xla_tuple %s8, %s9
  %s11 = sld [smem:[#allocation0]]
  $region85: #{tpu_custom_call.1} parent=0
    _
  %s13 = ssub.s32 1, %s11
  %s14 = scalar_select 0, %s13, %s11
  $region1: #{tpu_custom_call.1} parent=0
    #allocation2 [shape = 'u8[8192]{0}', space=vmem, size = 0x2000, scoped, tag = 'input window, operand 1']
    #allocation3 [shape = 's32[2]{0}', space=sflag, size = 0x8, scoped, tag = 'scoped memory for tpu_custom_call.1']
    #allocation4 [shape = 's32[2]{0}', space=sflag, size = 0x8, scoped, tag = 'scoped memory for tpu_custom_call.1']
    #allocation5 [shape = 'u8[8192]{0}', space=vmem, size = 0x2000, scoped, tag = 'input window, operand 3, single buffered']
    #allocation6 [shape = 's32[1]{0}', space=sflag, size = 0x4, scoped, tag = 'scoped memory for tpu_custom_call.1']
    #allocation7 [shape = 'u8[65536]{0}', space=vmem, size = 0x10000, scoped, tag = 'input window, operand 6, single buffered']
    #allocation8 [shape = 'u8[8192]{0}', space=vmem, size = 0x2000, scoped, tag = 'output window, operand 0']
    #allocation9 [shape = 'u8[8192]{0}', space=vmem, size = 0x2000, scoped, tag = 'output window, operand 1']
    #allocation10 [shape = 's32[2]{0}', space=sflag, size = 0x8, scoped, tag = 'scoped memory for tpu_custom_call.1']
    %15 = vsyncpa [#allocation3], 0
    %s16 = scalar_lea.sflag [#allocation3], 1
    %17 = vsyncpa %s16, 0
    %18 = vsyncpa [#allocation6], 0
    %19 = vsyncpa [#allocation4], 0
    %s20 = scalar_lea.sflag [#allocation4], 1
    %21 = vsyncpa %s20, 0
    %22 = vsyncpa [#allocation10], 0
    %s23 = scalar_lea.sflag [#allocation10], 1
    %24 = vsyncpa %s23, 0
    loop: start=0, step=1, limit=4
    $region2: #{tpu_custom_call.1} parent=1 // loop_pre_header
      _
    $region3: #{tpu_custom_call.1} parent=1 // loop_header
      %s26 = sphi 0, %s30
      %p27 = scmp.ge.s32.totalorder %s26, 4
      %s36 = sphi 0, %s38
      %s39 = sphi 0, %s36
      %s40 = sphi 0, %s39
      %s56 = sphi 0, %s40
      %s62 = sphi 0, %s64
      %s65 = sphi 0, %s62
      %s66 = sphi 0, %s65
      %s82 = sphi 0, %s66
      %s86 = sphi 0, %s86
      %s88 = sphi 0, %s86
      %s89 = sphi 0, %s88
      %s103 = sphi 0, %s89
      %s107 = sphi 0, %s107
      %s109 = sphi 0, %s107
      %s110 = sphi 0, %s109
      %s124 = sphi 0, %s110
      %s128 = sphi 0, %s128
      %s130 = sphi 0, %s128
      %s131 = sphi 0, %s130
      %s145 = sphi 0, %s131
      %s149 = sphi 0, %s149
      %s151 = sphi 0, %s149
      %s152 = sphi 0, %s151
      %s166 = sphi 0, %s152
      %s170 = sphi 0, %s170
      %s172 = sphi 0, %s170
      %s173 = sphi 0, %s172
      %s187 = sphi 0, %s173
      %s191 = sphi 0, %s191
      %s193 = sphi 0, %s191
      %s194 = sphi 0, %s193
      %s208 = sphi 0, %s194
      %s214 = sphi 0, %s216
      %s217 = sphi 0, %s214
      %s218 = sphi 0, %s217
      %s234 = sphi 0, %s218
      %s240 = sphi 0, %s242
      %s243 = sphi 0, %s240
      %s244 = sphi 0, %s243
      %s260 = sphi 0, %s244
    $region4: #{tpu_custom_call.1} parent=1 // loop_header_branch
      %29 = sbr.rel (%p27) target = $region8
    $region5: #{tpu_custom_call.1} parent=1 // loop_body
      %s31 = ssub.s32 %s26, 1
      %s32 = ssub.s32 %s26, 2
      %s33 = sadd.s32 %s26, 1
      %s34 = ssub.s32 %s26, %s33
      %p35 = scmp.eq.s32.totalorder %s34, 0
      %s37 = sadd.s32 %s36, 1
      %s38 = scalar_select %p35, %s36, %s37
      %p41 = pneg %p35
      %p42 = scmp.eq.s32.totalorder %s26, 1
      %p43 = por %p41, %p42
      %p44 = scmp.ne.s32.totalorder %s36, %s39
      %p45 = scmp.eq.s32.totalorder %s26, 0
      %p46 = por %p44, %p45
      %p47 = scmp.ne.s32.totalorder %s36, %s39
      %p48 = scmp.eq.s32.totalorder %s31, 1
      %p49 = por %p47, %p48
      %p50 = scmp.ne.s32.totalorder %s39, %s40
      %p51 = scmp.eq.s32.totalorder %s31, 0
      %p52 = por %p50, %p51
      %p53 = scmp.ne.s32.totalorder %s39, %s40
      %p54 = scmp.eq.s32.totalorder %s32, 1
      %p55 = por %p53, %p54
      %p57 = scmp.ne.s32.totalorder %s40, %s56
      %p58 = scmp.eq.s32.totalorder %s32, 0
      %p59 = por %p57, %p58
      %s60 = ssub.s32 %s26, %s33
      %p61 = scmp.eq.s32.totalorder %s60, 0
      %s63 = sadd.s32 %s62, 1
      %s64 = scalar_select %p61, %s62, %s63
      %p67 = pneg %p61
      %p68 = scmp.eq.s32.totalorder %s26, 1
      %p69 = por %p67, %p68
      %p70 = scmp.ne.s32.totalorder %s62, %s65
      %p71 = scmp.eq.s32.totalorder %s26, 0
      %p72 = por %p70, %p71
      %p73 = scmp.ne.s32.totalorder %s62, %s65
      %p74 = scmp.eq.s32.totalorder %s31, 1
      %p75 = por %p73, %p74
      %p76 = scmp.ne.s32.totalorder %s65, %s66
      %p77 = scmp.eq.s32.totalorder %s31, 0
      %p78 = por %p76, %p77
      %p79 = scmp.ne.s32.totalorder %s65, %s66
      %p80 = scmp.eq.s32.totalorder %s32, 1
      %p81 = por %p79, %p80
      %p83 = scmp.ne.s32.totalorder %s66, %s82
      %p84 = scmp.eq.s32.totalorder %s32, 0
      %p85 = por %p83, %p84
      %s87 = sadd.s32 %s86, 1
      %p90 = scmp.eq.s32.totalorder %s26, 1
      %p91 = scmp.ne.s32.totalorder %s86, %s88
      %p92 = scmp.eq.s32.totalorder %s26, 0
      %p93 = por %p91, %p92
      %p94 = scmp.ne.s32.totalorder %s86, %s88
      %p95 = scmp.eq.s32.totalorder %s31, 1
      %p96 = por %p94, %p95
      %p97 = scmp.ne.s32.totalorder %s88, %s89
      %p98 = scmp.eq.s32.totalorder %s31, 0
      %p99 = por %p97, %p98
      %p100 = scmp.ne.s32.totalorder %s88, %s89
      %p101 = scmp.eq.s32.totalorder %s32, 1
      %p102 = por %p100, %p101
      %p104 = scmp.ne.s32.totalorder %s89, %s103
      %p105 = scmp.eq.s32.totalorder %s32, 0
      %p106 = por %p104, %p105
      %s108 = sadd.s32 %s107, 1
      %p111 = scmp.eq.s32.totalorder %s26, 1
      %p112 = scmp.ne.s32.totalorder %s107, %s109
      %p113 = scmp.eq.s32.totalorder %s26, 0
      %p114 = por %p112, %p113
      %p115 = scmp.ne.s32.totalorder %s107, %s109
      %p116 = scmp.eq.s32.totalorder %s31, 1
      %p117 = por %p115, %p116
      %p118 = scmp.ne.s32.totalorder %s109, %s110
      %p119 = scmp.eq.s32.totalorder %s31, 0
      %p120 = por %p118, %p119
      %p121 = scmp.ne.s32.totalorder %s109, %s110
      %p122 = scmp.eq.s32.totalorder %s32, 1
      %p123 = por %p121, %p122
      %p125 = scmp.ne.s32.totalorder %s110, %s124
      %p126 = scmp.eq.s32.totalorder %s32, 0
      %p127 = por %p125, %p126
      %s129 = sadd.s32 %s128, 1
      %p132 = scmp.eq.s32.totalorder %s26, 1
      %p133 = scmp.ne.s32.totalorder %s128, %s130
      %p134 = scmp.eq.s32.totalorder %s26, 0
      %p135 = por %p133, %p134
      %p136 = scmp.ne.s32.totalorder %s128, %s130
      %p137 = scmp.eq.s32.totalorder %s31, 1
      %p138 = por %p136, %p137
      %p139 = scmp.ne.s32.totalorder %s130, %s131
      %p140 = scmp.eq.s32.totalorder %s31, 0
      %p141 = por %p139, %p140
      %p142 = scmp.ne.s32.totalorder %s130, %s131
      %p143 = scmp.eq.s32.totalorder %s32, 1
      %p144 = por %p142, %p143
      %p146 = scmp.ne.s32.totalorder %s131, %s145
      %p147 = scmp.eq.s32.totalorder %s32, 0
      %p148 = por %p146, %p147
      %s150 = sadd.s32 %s149, 1
      %p153 = scmp.eq.s32.totalorder %s26, 1
      %p154 = scmp.ne.s32.totalorder %s149, %s151
      %p155 = scmp.eq.s32.totalorder %s26, 0
      %p156 = por %p154, %p155
      %p157 = scmp.ne.s32.totalorder %s149, %s151
      %p158 = scmp.eq.s32.totalorder %s31, 1
      %p159 = por %p157, %p158
      %p160 = scmp.ne.s32.totalorder %s151, %s152
      %p161 = scmp.eq.s32.totalorder %s31, 0
      %p162 = por %p160, %p161
      %p163 = scmp.ne.s32.totalorder %s151, %s152
      %p164 = scmp.eq.s32.totalorder %s32, 1
      %p165 = por %p163, %p164
      %p167 = scmp.ne.s32.totalorder %s152, %s166
      %p168 = scmp.eq.s32.totalorder %s32, 0
      %p169 = por %p167, %p168
      %s171 = sadd.s32 %s170, 1
      %p174 = scmp.eq.s32.totalorder %s26, 1
      %p175 = scmp.ne.s32.totalorder %s170, %s172
      %p176 = scmp.eq.s32.totalorder %s26, 0
      %p177 = por %p175, %p176
      %p178 = scmp.ne.s32.totalorder %s170, %s172
      %p179 = scmp.eq.s32.totalorder %s31, 1
      %p180 = por %p178, %p179
      %p181 = scmp.ne.s32.totalorder %s172, %s173
      %p182 = scmp.eq.s32.totalorder %s31, 0
      %p183 = por %p181, %p182
      %p184 = scmp.ne.s32.totalorder %s172, %s173
      %p185 = scmp.eq.s32.totalorder %s32, 1
      %p186 = por %p184, %p185
      %p188 = scmp.ne.s32.totalorder %s173, %s187
      %p189 = scmp.eq.s32.totalorder %s32, 0
      %p190 = por %p188, %p189
      %s192 = sadd.s32 %s191, 1
      %p195 = scmp.eq.s32.totalorder %s26, 1
      %p196 = scmp.ne.s32.totalorder %s191, %s193
      %p197 = scmp.eq.s32.totalorder %s26, 0
      %p198 = por %p196, %p197
      %p199 = scmp.ne.s32.totalorder %s191, %s193
      %p200 = scmp.eq.s32.totalorder %s31, 1
      %p201 = por %p199, %p200
      %p202 = scmp.ne.s32.totalorder %s193, %s194
      %p203 = scmp.eq.s32.totalorder %s31, 0
      %p204 = por %p202, %p203
      %p205 = scmp.ne.s32.totalorder %s193, %s194
      %p206 = scmp.eq.s32.totalorder %s32, 1
      %p207 = por %p205, %p206
      %p209 = scmp.ne.s32.totalorder %s194, %s208
      %p210 = scmp.eq.s32.totalorder %s32, 0
      %p211 = por %p209, %p210
      %s212 = ssub.s32 %s26, %s33
      %p213 = scmp.eq.s32.totalorder %s212, 0
      %s215 = sadd.s32 %s214, 1
      %s216 = scalar_select %p213, %s214, %s215
      %p219 = pneg %p213
      %p220 = scmp.eq.s32.totalorder %s26, 1
      %p221 = por %p219, %p220
      %p222 = scmp.ne.s32.totalorder %s214, %s217
      %p223 = scmp.eq.s32.totalorder %s26, 0
      %p224 = por %p222, %p223
      %p225 = scmp.ne.s32.totalorder %s214, %s217
      %p226 = scmp.eq.s32.totalorder %s31, 1
      %p227 = por %p225, %p226
      %p228 = scmp.ne.s32.totalorder %s217, %s218
      %p229 = scmp.eq.s32.totalorder %s31, 0
      %p230 = por %p228, %p229
      %p231 = scmp.ne.s32.totalorder %s217, %s218
      %p232 = scmp.eq.s32.totalorder %s32, 1
      %p233 = por %p231, %p232
      %p235 = scmp.ne.s32.totalorder %s218, %s234
      %p236 = scmp.eq.s32.totalorder %s32, 0
      %p237 = por %p235, %p236
      %s238 = ssub.s32 %s26, %s33
      %p239 = scmp.eq.s32.totalorder %s238, 0
      %s241 = sadd.s32 %s240, 1
      %s242 = scalar_select %p239, %s240, %s241
      %p245 = pneg %p239
      %p246 = scmp.eq.s32.totalorder %s26, 1
      %p247 = por %p245, %p246
      %p248 = scmp.ne.s32.totalorder %s240, %s243
      %p249 = scmp.eq.s32.totalorder %s26, 0
      %p250 = por %p248, %p249
      %p251 = scmp.ne.s32.totalorder %s240, %s243
      %p252 = scmp.eq.s32.totalorder %s31, 1
      %p253 = por %p251, %p252
      %p254 = scmp.ne.s32.totalorder %s243, %s244
      %p255 = scmp.eq.s32.totalorder %s31, 0
      %p256 = por %p254, %p255
      %p257 = scmp.ne.s32.totalorder %s243, %s244
      %p258 = scmp.eq.s32.totalorder %s32, 1
      %p259 = por %p257, %p258
      %p261 = scmp.ne.s32.totalorder %s244, %s260
      %p262 = scmp.eq.s32.totalorder %s32, 0
      %p263 = por %p261, %p262
      %p264 = scmp.le.s32.totalorder 1, %s26
      %p265 = scmp.lt.s32.totalorder %s26, 3
      %p266 = pnand %p264, %p265
      %p267 = pneg %p266
      // Predicated region
      $region9: #{tpu_custom_call.1} parent=5 // pred_check
        _
      $region10: #{tpu_custom_call.1} parent=5 // pred_check_branch
        %269 = sbr.rel (%p266) target = $region12
      $region11: #{tpu_custom_call.1} parent=5 // pred_region
        %s270 = ssub.s32 %s26, 1
        // Predicated region
        $region13: #{tpu_custom_call.1} parent=11 // pred_check
          %p271 = pneg %p99
        $region14: #{tpu_custom_call.1} parent=11 // pred_check_branch
          %273 = sbr.rel (%p271) target = $region16
        $region15: #{tpu_custom_call.1} parent=11 // pred_region
          _
        $region16: #{tpu_custom_call.1} parent=11 // pred_fallthru
          _
        // Predicated region
        $region17: #{tpu_custom_call.1} parent=11 // pred_check
          %p274 = pneg %p120
        $region18: #{tpu_custom_call.1} parent=11 // pred_check_branch
          %276 = sbr.rel (%p274) target = $region20
        $region19: #{tpu_custom_call.1} parent=11 // pred_region
          %s278 = ssub.s32 256, 256
          %279 = vsyncadd [#allocation6], %s278
          %s280 = sshll.u32 [#allocation5], 4
          %s281 = int_to_ptr.vmem [resolvable:$true] %s280
          %286 = dma.hbm_to_vmem [thread:$0]  %s3, 256, %s281, [#allocation6], 128, 128, 8
        $region20: #{tpu_custom_call.1} parent=11 // pred_fallthru
          _
        // Predicated region
        $region21: #{tpu_custom_call.1} parent=11 // pred_check
          %p287 = pneg %p141
        $region22: #{tpu_custom_call.1} parent=11 // pred_check_branch
          %289 = sbr.rel (%p287) target = $region24
        $region23: #{tpu_custom_call.1} parent=11 // pred_region
          _
        $region24: #{tpu_custom_call.1} parent=11 // pred_fallthru
          _
        // Predicated region
        $region25: #{tpu_custom_call.1} parent=11 // pred_check
          %p290 = pneg %p162
        $region26: #{tpu_custom_call.1} parent=11 // pred_check_branch
          %292 = sbr.rel (%p290) target = $region28
        $region27: #{tpu_custom_call.1} parent=11 // pred_region
          _
        $region28: #{tpu_custom_call.1} parent=11 // pred_fallthru
          _
        // Predicated region
        $region29: #{tpu_custom_call.1} parent=11 // pred_check
          %p293 = pneg %p183
        $region30: #{tpu_custom_call.1} parent=11 // pred_check_branch
          %295 = sbr.rel (%p293) target = $region32
        $region31: #{tpu_custom_call.1} parent=11 // pred_region
          %s297 = ssub.s32 2048, 2048
          %298 = vsyncadd [#allocation6], %s297
          %s299 = sshll.u32 [#allocation7], 4
          %s300 = int_to_ptr.vmem [resolvable:$true] %s299
          %305 = dma.hbm_to_vmem [thread:$0]  %s6, 2048, %s300, [#allocation6], 128, 128, 8
        $region32: #{tpu_custom_call.1} parent=11 // pred_fallthru
          _
        // Predicated region
        $region33: #{tpu_custom_call.1} parent=11 // pred_check
          %p306 = pneg %p204
        $region34: #{tpu_custom_call.1} parent=11 // pred_check_branch
          %308 = sbr.rel (%p306) target = $region36
        $region35: #{tpu_custom_call.1} parent=11 // pred_region
          _
        $region36: #{tpu_custom_call.1} parent=11 // pred_fallthru
          _
      $region12: #{tpu_custom_call.1} parent=5 // pred_fallthru
        _
      %p309 = scmp.lt.s32.totalorder %s26, 2
      // Predicated region
      $region37: #{tpu_custom_call.1} parent=5 // pred_check
        %p310 = pneg %p309
      $region38: #{tpu_custom_call.1} parent=5 // pred_check_branch
        %312 = sbr.rel (%p310) target = $region40
      $region39: #{tpu_custom_call.1} parent=5 // pred_region
        // Predicated region
        $region41: #{tpu_custom_call.1} parent=39 // pred_check
          %p313 = pneg %p46
        $region42: #{tpu_custom_call.1} parent=39 // pred_check_branch
          %315 = sbr.rel (%p313) target = $region44
        $region43: #{tpu_custom_call.1} parent=39 // pred_region
          %p316 = scmp.lt.s32.totalorder %s26, 1
          %s317 = scalar_select %p316, %s26, 1
          %s318 = smul.addr %s317, 8
          %s319 = scalar_lea.vmem %s0, %s318
        $region44: #{tpu_custom_call.1} parent=39 // pred_fallthru
          _
        // Predicated region
        $region45: #{tpu_custom_call.1} parent=39 // pred_check
          %p320 = pneg %p72
        $region46: #{tpu_custom_call.1} parent=39 // pred_check_branch
          %322 = sbr.rel (%p320) target = $region48
        $region47: #{tpu_custom_call.1} parent=39 // pred_region
          %s323 = sand.u32 %s62, 1
          %s324 = scalar_lea.sflag [#allocation3], %s323
          %s325 = sand.u32 %s62, 1
          %s326 = smul.addr %s325, 8
          %s327 = scalar_lea.vmem [#allocation2], %s326
          %s329 = ssub.s32 128, 128
          %330 = vsyncadd %s324, %s329
          %s331 = smul.addr %s26, 128
          %s332 = scalar_lea.hbm %s1, %s331
          %s334 = sshll.u32 %s327, 4
          %s335 = int_to_ptr.vmem [resolvable:$true] %s334
          %337 = dma.hbm_to_vmem [thread:$0]  %s332, 128, %s335, %s324
        $region48: #{tpu_custom_call.1} parent=39 // pred_fallthru
          _
      $region40: #{tpu_custom_call.1} parent=5 // pred_fallthru
        _
      %p338 = scmp.le.s32.totalorder 1, %s26
      %p339 = scmp.lt.s32.totalorder %s26, 3
      %p340 = pnand %p338, %p339
      %p341 = pneg %p340
      // Predicated region
      $region49: #{tpu_custom_call.1} parent=5 // pred_check
        _
      $region50: #{tpu_custom_call.1} parent=5 // pred_check_branch
        %343 = sbr.rel (%p340) target = $region52
      $region51: #{tpu_custom_call.1} parent=5 // pred_region
        %s344 = ssub.s32 %s26, 1
        %s345 = sand.u32 %s65, 1
        %s346 = scalar_lea.sflag [#allocation3], %s345
        %s347 = sand.u32 %s65, 1
        %s348 = smul.addr %s347, 8
        %s349 = scalar_lea.vmem [#allocation2], %s348
        // Predicated region
        $region53: #{tpu_custom_call.1} parent=51 // pred_check
          %p350 = pneg %p78
        $region54: #{tpu_custom_call.1} parent=51 // pred_check_branch
          %352 = sbr.rel (%p350) target = $region56
        $region55: #{tpu_custom_call.1} parent=51 // pred_region
          %353 = dma.done %s346, 128
        $region56: #{tpu_custom_call.1} parent=51 // pred_fallthru
          _
        // Predicated region
        $region57: #{tpu_custom_call.1} parent=51 // pred_check
          %p354 = pneg %p120
        $region58: #{tpu_custom_call.1} parent=51 // pred_check_branch
          %356 = sbr.rel (%p354) target = $region60
        $region59: #{tpu_custom_call.1} parent=51 // pred_region
          %357 = dma.done [#allocation6], 256
        $region60: #{tpu_custom_call.1} parent=51 // pred_fallthru
          _
        // Predicated region
        $region61: #{tpu_custom_call.1} parent=51 // pred_check
          %p358 = pneg %p183
        $region62: #{tpu_custom_call.1} parent=51 // pred_check_branch
          %360 = sbr.rel (%p358) target = $region64
        $region63: #{tpu_custom_call.1} parent=51 // pred_region
          %361 = dma.done [#allocation6], 2048
        $region64: #{tpu_custom_call.1} parent=51 // pred_fallthru
          _
        %p362 = scmp.lt.s32.totalorder %s31, 1
        %s363 = scalar_select %p362, %s31, 1
        %s364 = smul.addr %s363, 8
        %s365 = scalar_lea.vmem %s0, %s364
        %p366 = pneg %p52
        %p367 = pneg %p49
        %s368 = sand.u32 %s65, 1
        %s369 = scalar_lea.sflag [#allocation3], %s368
        %s370 = sand.u32 %s65, 1
        %s371 = smul.addr %s370, 8
        %s372 = scalar_lea.vmem [#allocation2], %s371
        %p373 = pneg %p78
        %p374 = pneg %p75
        %p375 = pneg %p99
        %p376 = pneg %p96
        %p377 = pneg %p120
        %p378 = pneg %p117
        %p379 = pneg %p141
        %p380 = pneg %p138
        %p381 = pneg %p162
        %p382 = pneg %p159
        %p383 = pneg %p183
        %p384 = pneg %p180
        %p385 = pneg %p204
        %p386 = pneg %p201
        %p387 = pneg %p230
        %p388 = pneg %p227
        %s389 = sand.u32 %s217, 1
        %s390 = scalar_lea.sflag [#allocation4], %s389
        %s391 = sand.u32 %s217, 1
        %s392 = smul.addr %s391, 8
        %s393 = scalar_lea.vmem [#allocation8], %s392
        %p394 = pneg %p256
        %p395 = pneg %p253
        %s396 = sand.u32 %s243, 1
        %s397 = scalar_lea.sflag [#allocation10], %s396
        %s398 = sand.u32 %s243, 1
        %s399 = smul.addr %s398, 8
        %s400 = scalar_lea.vmem [#allocation9], %s399
        %p401 = scmp.lt.s32.totalorder %s31, 1
        %s402 = scalar_select %p401, %s31, 1
        %s403 = smul.addr %s402, 8
        %s404 = scalar_lea.vmem %s0, %s403
        %v405 = vld [vmem:[%s404] sm:$0xff]
        %v406 = vld [vmem:[%s349] sm:$0xff]
        %v407 = vld [vmem:[%s2] sm:$0xff]
        %v408 = vld [vmem:[%s2 + $0x8] sm:$0xff]
        %v409 = vld [vmem:[%s2 + $0x10] sm:$0xff]
        %v410 = vld [vmem:[%s2 + $0x18] sm:$0xff]
        %v411 = vld [vmem:[%s2 + $0x20] sm:$0xff]
        %v412 = vld [vmem:[%s2 + $0x28] sm:$0xff]
        %v413 = vld [vmem:[%s2 + $0x30] sm:$0xff]
        %v414 = vld [vmem:[%s2 + $0x38] sm:$0xff]
        %v415 = vld [vmem:[%s2 + $0x40] sm:$0xff]
        %v416 = vld [vmem:[%s2 + $0x48] sm:$0xff]
        %v417 = vld [vmem:[%s2 + $0x50] sm:$0xff]
        %v418 = vld [vmem:[%s2 + $0x58] sm:$0xff]
        %v419 = vld [vmem:[%s2 + $0x60] sm:$0xff]
        %v420 = vld [vmem:[%s2 + $0x68] sm:$0xff]
        %v421 = vld [vmem:[%s2 + $0x70] sm:$0xff]
        %v422 = vld [vmem:[%s2 + $0x78] sm:$0xff]
        %423 = vmatprep.subr.mxu0 0.0
        %424 = vmatpush1.msra.mxu0 %v407
        %425 = vmatprep.subr.mxu0 0.0
        %426 = vmatpush1.msra.mxu0 %v408
        %427 = vmatprep.subr.mxu0 0.0
        %428 = vmatpush1.msra.mxu0 %v409
        %429 = vmatprep.subr.mxu0 0.0
        %430 = vmatpush1.msra.mxu0 %v410
        %431 = vmatprep.subr.mxu0 0.0
        %432 = vmatpush1.msra.mxu0 %v411
        %433 = vmatprep.subr.mxu0 0.0
        %434 = vmatpush1.msra.mxu0 %v412
        %435 = vmatprep.subr.mxu0 0.0
        %436 = vmatpush1.msra.mxu0 %v413
        %437 = vmatprep.subr.mxu0 0.0
        %438 = vmatpush1.msra.mxu0 %v414
        %439 = vmatprep.subr.mxu0 0.0
        %440 = vmatpush1.msra.mxu0 %v415
        %441 = vmatprep.subr.mxu0 0.0
        %442 = vmatpush1.msra.mxu0 %v416
        %443 = vmatprep.subr.mxu0 0.0
        %444 = vmatpush1.msra.mxu0 %v417
        %445 = vmatprep.subr.mxu0 0.0
        %446 = vmatpush1.msra.mxu0 %v418
        %447 = vmatprep.subr.mxu0 0.0
        %448 = vmatpush1.msra.mxu0 %v419
        %449 = vmatprep.subr.mxu0 0.0
        %450 = vmatpush1.msra.mxu0 %v420
        %451 = vmatprep.subr.mxu0 0.0
        %452 = vmatpush1.msra.mxu0 %v421
        %453 = vmatprep.subr.mxu0 0.0
        %454 = vmatpush1.msra.mxu0 %v422
        %455 = vmatprep.subr.mxu0 0.0
        %456 = vmatpush1.msra.mxu0 0.0
        %457 = vmatprep.subr.mxu0 0.0
        %458 = vmatpush1.msra.mxu0 0.0
        %459 = vmatprep.subr.mxu0 0.0
        %460 = vmatpush1.msra.mxu0 0.0
        %461 = vmatprep.subr.mxu0 0.0
        %462 = vmatpush1.msra.mxu0 0.0
        %463 = vmatprep.subr.mxu0 0.0
        %464 = vmatpush1.msra.mxu0 0.0
        %465 = vmatprep.subr.mxu0 0.0
        %466 = vmatpush1.msra.mxu0 0.0
        %467 = vmatprep.subr.mxu0 0.0
        %468 = vmatpush1.msra.mxu0 0.0
        %469 = vmatprep.subr.mxu0 0.0
        %470 = vmatpush1.msra.mxu0 0.0
        %471 = vmatprep.subr.mxu0 0.0
        %472 = vmatpush1.msra.mxu0 0.0
        %473 = vmatprep.subr.mxu0 0.0
        %474 = vmatpush1.msra.mxu0 0.0
        %475 = vmatprep.subr.mxu0 0.0
        %476 = vmatpush1.msra.mxu0 0.0
        %477 = vmatprep.subr.mxu0 0.0
        %478 = vmatpush1.msra.mxu0 0.0
        %479 = vmatprep.subr.mxu0 0.0
        %480 = vmatpush1.msra.mxu0 0.0
        %481 = vmatprep.subr.mxu0 0.0
        %482 = vmatpush1.msra.mxu0 0.0
        %483 = vmatprep.subr.mxu0 0.0
        %484 = vmatpush1.msra.mxu0 0.0
        %485 = vmatprep.subr.mxu0 0.0
        %486 = vmatpush1.msra.mxu0 0.0
        %487 = vmatprep.mubr.f32.mxu0 0.0
        %488 = vmatmul.mubr.f32.gmra.mrb[0].mxu0 %v406
        %v489 = vpop.f32.mrb[0].mxu0
        %v490 = vadd.f32 0.0, %v489
        %v491 = vpop.f32.mrb[0].mxu0
        %492 = vdwg.mxu0
        %vm493 = vcmask 130048
        %v494 = vsel %vm493, %v490, -inf
        %495 = vmax.xlane.f32.xlu0 %v494
        %v496 = vpop.xlane.xlu0 %495
        %v497 = vsub.f32 %v490, %v496
        %v498 = vmul.f32 %v497, 1.442695
        %v499 = vpow.pop %v498
        %v500 = vsel %vm493, %v499, 0.0
        %501 = vadd.xlane.f32.xlu0 %v500
        %v502 = vpop.xlane.xlu0 %501
        %v503 = vrcp.pop %v502
        %v504 = vmul.f32 %v502, %v503
        %v505 = vsub.f32 2.0, %v504
        %v506 = vmul.f32 %v503, %v505
        %v507 = vmul.f32 %v499, %v506
        %v508 = vld [vmem:[#allocation5] sm:$0xff]
        %v509 = vld [vmem:[#allocation5 + $0x8] sm:$0xff]
        %v511 = vsel %vm493, %v507, 0
        %513 = vmatprep.subr.mxu0 0.0
        %514 = vmatpush1.msra.mxu0 %v508
        %515 = vmatprep.subr.mxu0 0.0
        %516 = vmatpush1.msra.mxu0 %v509
        %517 = vmatprep.subr.mxu0 0.0
        %518 = vmatpush1.msra.mxu0 0.0
        %519 = vmatprep.subr.mxu0 0.0
        %520 = vmatpush1.msra.mxu0 0.0
        %521 = vmatprep.subr.mxu0 0.0
        %522 = vmatpush1.msra.mxu0 0.0
        %523 = vmatprep.subr.mxu0 0.0
        %524 = vmatpush1.msra.mxu0 0.0
        %525 = vmatprep.subr.mxu0 0.0
        %526 = vmatpush1.msra.mxu0 0.0
        %527 = vmatprep.subr.mxu0 0.0
        %528 = vmatpush1.msra.mxu0 0.0
        %529 = vmatprep.subr.mxu0 0.0
        %530 = vmatpush1.msra.mxu0 0.0
        %531 = vmatprep.subr.mxu0 0.0
        %532 = vmatpush1.msra.mxu0 0.0
        %533 = vmatprep.subr.mxu0 0.0
        %534 = vmatpush1.msra.mxu0 0.0
        %535 = vmatprep.subr.mxu0 0.0
        %536 = vmatpush1.msra.mxu0 0.0
        %537 = vmatprep.subr.mxu0 0.0
        %538 = vmatpush1.msra.mxu0 0.0
        %539 = vmatprep.subr.mxu0 0.0
        %540 = vmatpush1.msra.mxu0 0.0
        %541 = vmatprep.subr.mxu0 0.0
        %542 = vmatpush1.msra.mxu0 0.0
        %543 = vmatprep.subr.mxu0 0.0
        %544 = vmatpush1.msra.mxu0 0.0
        %545 = vmatprep.subr.mxu0 0.0
        %546 = vmatpush1.msra.mxu0 0.0
        %547 = vmatprep.subr.mxu0 0.0
        %548 = vmatpush1.msra.mxu0 0.0
        %549 = vmatprep.subr.mxu0 0.0
        %550 = vmatpush1.msra.mxu0 0.0
        %551 = vmatprep.subr.mxu0 0.0
        %552 = vmatpush1.msra.mxu0 0.0
        %553 = vmatprep.subr.mxu0 0.0
        %554 = vmatpush1.msra.mxu0 0.0
        %555 = vmatprep.subr.mxu0 0.0
        %556 = vmatpush1.msra.mxu0 0.0
        %557 = vmatprep.subr.mxu0 0.0
        %558 = vmatpush1.msra.mxu0 0.0
        %559 = vmatprep.subr.mxu0 0.0
        %560 = vmatpush1.msra.mxu0 0.0
        %561 = vmatprep.subr.mxu0 0.0
        %562 = vmatpush1.msra.mxu0 0.0
        %563 = vmatprep.subr.mxu0 0.0
        %564 = vmatpush1.msra.mxu0 0.0
        %565 = vmatprep.subr.mxu0 0.0
        %566 = vmatpush1.msra.mxu0 0.0
        %567 = vmatprep.subr.mxu0 0.0
        %568 = vmatpush1.msra.mxu0 0.0
        %569 = vmatprep.subr.mxu0 0.0
        %570 = vmatpush1.msra.mxu0 0.0
        %571 = vmatprep.subr.mxu0 0.0
        %572 = vmatpush1.msra.mxu0 0.0
        %573 = vmatprep.subr.mxu0 0.0
        %574 = vmatpush1.msra.mxu0 0.0
        %575 = vmatprep.subr.mxu0 0.0
        %576 = vmatpush1.msra.mxu0 0.0
        %577 = vmatprep.mubr.f32.mxu0 0.0
        %578 = vmatmul.mubr.f32.gmra.mrb[0].mxu0 %v511
        %v579 = vpop.f32.mrb[0].mxu0
        %v580 = vadd.f32 %v405, %v579
        %v581 = vpop.f32.mrb[0].mxu0
        %582 = vdwg.mxu0
        %v583 = vld [vmem:[%s4] sm:$0xff]
        %v584 = vld [vmem:[%s4 + $0x8] sm:$0xff]
        %v585 = vld [vmem:[%s4 + $0x10] sm:$0xff]
        %v586 = vld [vmem:[%s4 + $0x18] sm:$0xff]
        %v587 = vld [vmem:[%s4 + $0x20] sm:$0xff]
        %v588 = vld [vmem:[%s4 + $0x28] sm:$0xff]
        %v589 = vld [vmem:[%s4 + $0x30] sm:$0xff]
        %v590 = vld [vmem:[%s4 + $0x38] sm:$0xff]
        %v591 = vld [vmem:[%s4 + $0x40] sm:$0xff]
        %v592 = vld [vmem:[%s4 + $0x48] sm:$0xff]
        %v593 = vld [vmem:[%s4 + $0x50] sm:$0xff]
        %v594 = vld [vmem:[%s4 + $0x58] sm:$0xff]
        %v595 = vld [vmem:[%s4 + $0x60] sm:$0xff]
        %v596 = vld [vmem:[%s4 + $0x68] sm:$0xff]
        %v597 = vld [vmem:[%s4 + $0x70] sm:$0xff]
        %v598 = vld [vmem:[%s4 + $0x78] sm:$0xff]
        %v599 = vld [vmem:[%s5] sm:$0x1]
        %v601 = vlaneseq
        %v602 = vshrl.u32 %v601, 7
        %v603 = vsub.s32 0, %v602
        %v604 = vrot.slane %v599, %v603
        %606 = vmatprep.subr.mxu0 0.0
        %607 = vmatpush1.msra.mxu0 %v583
        %608 = vmatprep.subr.mxu0 0.0
        %609 = vmatpush1.msra.mxu0 %v584
        %610 = vmatprep.subr.mxu0 0.0
        %611 = vmatpush1.msra.mxu0 %v585
        %612 = vmatprep.subr.mxu0 0.0
        %613 = vmatpush1.msra.mxu0 %v586
        %614 = vmatprep.subr.mxu0 0.0
        %615 = vmatpush1.msra.mxu0 %v587
        %616 = vmatprep.subr.mxu0 0.0
        %617 = vmatpush1.msra.mxu0 %v588
        %618 = vmatprep.subr.mxu0 0.0
        %619 = vmatpush1.msra.mxu0 %v589
        %620 = vmatprep.subr.mxu0 0.0
        %621 = vmatpush1.msra.mxu0 %v590
        %622 = vmatprep.subr.mxu0 0.0
        %623 = vmatpush1.msra.mxu0 %v591
        %624 = vmatprep.subr.mxu0 0.0
        %625 = vmatpush1.msra.mxu0 %v592
        %626 = vmatprep.subr.mxu0 0.0
        %627 = vmatpush1.msra.mxu0 %v593
        %628 = vmatprep.subr.mxu0 0.0
        %629 = vmatpush1.msra.mxu0 %v594
        %630 = vmatprep.subr.mxu0 0.0
        %631 = vmatpush1.msra.mxu0 %v595
        %632 = vmatprep.subr.mxu0 0.0
        %633 = vmatpush1.msra.mxu0 %v596
        %634 = vmatprep.subr.mxu0 0.0
        %635 = vmatpush1.msra.mxu0 %v597
        %636 = vmatprep.subr.mxu0 0.0
        %637 = vmatpush1.msra.mxu0 %v598
        %638 = vmatprep.subr.mxu0 0.0
        %639 = vmatpush1.msra.mxu0 0.0
        %640 = vmatprep.subr.mxu0 0.0
        %641 = vmatpush1.msra.mxu0 0.0
        %642 = vmatprep.subr.mxu0 0.0
        %643 = vmatpush1.msra.mxu0 0.0
        %644 = vmatprep.subr.mxu0 0.0
        %645 = vmatpush1.msra.mxu0 0.0
        %646 = vmatprep.subr.mxu0 0.0
        %647 = vmatpush1.msra.mxu0 0.0
        %648 = vmatprep.subr.mxu0 0.0
        %649 = vmatpush1.msra.mxu0 0.0
        %650 = vmatprep.subr.mxu0 0.0
        %651 = vmatpush1.msra.mxu0 0.0
        %652 = vmatprep.subr.mxu0 0.0
        %653 = vmatpush1.msra.mxu0 0.0
        %654 = vmatprep.subr.mxu0 0.0
        %655 = vmatpush1.msra.mxu0 0.0
        %656 = vmatprep.subr.mxu0 0.0
        %657 = vmatpush1.msra.mxu0 0.0
        %658 = vmatprep.subr.mxu0 0.0
        %659 = vmatpush1.msra.mxu0 0.0
        %660 = vmatprep.subr.mxu0 0.0
        %661 = vmatpush1.msra.mxu0 0.0
        %662 = vmatprep.subr.mxu0 0.0
        %663 = vmatpush1.msra.mxu0 0.0
        %664 = vmatprep.subr.mxu0 0.0
        %665 = vmatpush1.msra.mxu0 0.0
        %666 = vmatprep.subr.mxu0 0.0
        %667 = vmatpush1.msra.mxu0 0.0
        %668 = vmatprep.subr.mxu0 0.0
        %669 = vmatpush1.msra.mxu0 0.0
        %670 = vmatprep.mubr.f32.mxu0 0.0
        %671 = vmatmul.mubr.f32.gmra.mrb[0].mxu0 %v580
        %v672 = vpop.f32.mrb[0].mxu0
        %v673 = vadd.f32 %v604, %v672
        %v674 = vpop.f32.mrb[0].mxu0
        %675 = vdwg.mxu0
        %v676 = vmul.f32 %v673, 0.5
        %v677 = vmul.f32 %v673, 0.70710677
        %v678 = verf.f32.pop %v677
        %v679 = vadd.f32 %v678, 1.0
        %v680 = vmul.f32 %v676, %v679
        %v681 = vld [vmem:[#allocation7] sm:$0xff]
        %v682 = vld [vmem:[#allocation7 + $0x8] sm:$0xff]
        %v683 = vld [vmem:[#allocation7 + $0x10] sm:$0xff]
        %v684 = vld [vmem:[#allocation7 + $0x18] sm:$0xff]
        %v685 = vld [vmem:[#allocation7 + $0x20] sm:$0xff]
        %v686 = vld [vmem:[#allocation7 + $0x28] sm:$0xff]
        %v687 = vld [vmem:[#allocation7 + $0x30] sm:$0xff]
        %v688 = vld [vmem:[#allocation7 + $0x38] sm:$0xff]
        %v689 = vld [vmem:[#allocation7 + $0x40] sm:$0xff]
        %v690 = vld [vmem:[#allocation7 + $0x48] sm:$0xff]
        %v691 = vld [vmem:[#allocation7 + $0x50] sm:$0xff]
        %v692 = vld [vmem:[#allocation7 + $0x58] sm:$0xff]
        %v693 = vld [vmem:[#allocation7 + $0x60] sm:$0xff]
        %v694 = vld [vmem:[#allocation7 + $0x68] sm:$0xff]
        %v695 = vld [vmem:[#allocation7 + $0x70] sm:$0xff]
        %v696 = vld [vmem:[#allocation7 + $0x78] sm:$0xff]
        %v697 = vld [vmem:[%s7] sm:$0x1]
        %v699 = vlaneseq
        %v700 = vshrl.u32 %v699, 7
        %v701 = vsub.s32 0, %v700
        %v702 = vrot.slane %v697, %v701
        %704 = vmatprep.subr.mxu0 0.0
        %705 = vmatpush1.msra.mxu0 %v681
        %706 = vmatprep.subr.mxu0 0.0
        %707 = vmatpush1.msra.mxu0 %v682
        %708 = vmatprep.subr.mxu0 0.0
        %709 = vmatpush1.msra.mxu0 %v683
        %710 = vmatprep.subr.mxu0 0.0
        %711 = vmatpush1.msra.mxu0 %v684
        %712 = vmatprep.subr.mxu0 0.0
        %713 = vmatpush1.msra.mxu0 %v685
        %714 = vmatprep.subr.mxu0 0.0
        %715 = vmatpush1.msra.mxu0 %v686
        %716 = vmatprep.subr.mxu0 0.0
        %717 = vmatpush1.msra.mxu0 %v687
        %718 = vmatprep.subr.mxu0 0.0
        %719 = vmatpush1.msra.mxu0 %v688
        %720 = vmatprep.subr.mxu0 0.0
        %721 = vmatpush1.msra.mxu0 %v689
        %722 = vmatprep.subr.mxu0 0.0
        %723 = vmatpush1.msra.mxu0 %v690
        %724 = vmatprep.subr.mxu0 0.0
        %725 = vmatpush1.msra.mxu0 %v691
        %726 = vmatprep.subr.mxu0 0.0
        %727 = vmatpush1.msra.mxu0 %v692
        %728 = vmatprep.subr.mxu0 0.0
        %729 = vmatpush1.msra.mxu0 %v693
        %730 = vmatprep.subr.mxu0 0.0
        %731 = vmatpush1.msra.mxu0 %v694
        %732 = vmatprep.subr.mxu0 0.0
        %733 = vmatpush1.msra.mxu0 %v695
        %734 = vmatprep.subr.mxu0 0.0
        %735 = vmatpush1.msra.mxu0 %v696
        %736 = vmatprep.subr.mxu0 0.0
        %737 = vmatpush1.msra.mxu0 0.0
        %738 = vmatprep.subr.mxu0 0.0
        %739 = vmatpush1.msra.mxu0 0.0
        %740 = vmatprep.subr.mxu0 0.0
        %741 = vmatpush1.msra.mxu0 0.0
        %742 = vmatprep.subr.mxu0 0.0
        %743 = vmatpush1.msra.mxu0 0.0
        %744 = vmatprep.subr.mxu0 0.0
        %745 = vmatpush1.msra.mxu0 0.0
        %746 = vmatprep.subr.mxu0 0.0
        %747 = vmatpush1.msra.mxu0 0.0
        %748 = vmatprep.subr.mxu0 0.0
        %749 = vmatpush1.msra.mxu0 0.0
        %750 = vmatprep.subr.mxu0 0.0
        %751 = vmatpush1.msra.mxu0 0.0
        %752 = vmatprep.subr.mxu0 0.0
        %753 = vmatpush1.msra.mxu0 0.0
        %754 = vmatprep.subr.mxu0 0.0
        %755 = vmatpush1.msra.mxu0 0.0
        %756 = vmatprep.subr.mxu0 0.0
        %757 = vmatpush1.msra.mxu0 0.0
        %758 = vmatprep.subr.mxu0 0.0
        %759 = vmatpush1.msra.mxu0 0.0
        %760 = vmatprep.subr.mxu0 0.0
        %761 = vmatpush1.msra.mxu0 0.0
        %762 = vmatprep.subr.mxu0 0.0
        %763 = vmatpush1.msra.mxu0 0.0
        %764 = vmatprep.subr.mxu0 0.0
        %765 = vmatpush1.msra.mxu0 0.0
        %766 = vmatprep.subr.mxu0 0.0
        %767 = vmatpush1.msra.mxu0 0.0
        %768 = vmatprep.mubr.f32.mxu0 0.0
        %769 = vmatmul.mubr.f32.gmra.mrb[0].mxu0 %v680
        %v770 = vpop.f32.mrb[0].mxu0
        %v771 = vadd.f32 %v702, %v770
        %v772 = vpop.f32.mrb[0].mxu0
        %773 = vdwg.mxu0
        %v774 = vadd.f32 %v771, %v580
        %775 = vst [vmem:[%s393] sm:$0xff] %v774
        %776 = vst.msk [vmem:[%s400] sm:$0xff] %vm493, %v507
        %s777 = sand.u32 %s217, 1
        %s778 = scalar_lea.sflag [#allocation4], %s777
        %s779 = sand.u32 %s217, 1
        %s780 = smul.addr %s779, 8
        %s781 = scalar_lea.vmem [#allocation8], %s780
        %s782 = sand.u32 %s243, 1
        %s783 = scalar_lea.sflag [#allocation10], %s782
        %s784 = sand.u32 %s243, 1
        %s785 = smul.addr %s784, 8
        %s786 = scalar_lea.vmem [#allocation9], %s785
        // Predicated region
        $region65: #{tpu_custom_call.1} parent=51 // pred_check
          %p787 = pneg %p227
        $region66: #{tpu_custom_call.1} parent=51 // pred_check_branch
          %789 = sbr.rel (%p787) target = $region68
        $region67: #{tpu_custom_call.1} parent=51 // pred_region
          %s791 = ssub.s32 128, 128
          %792 = vsyncadd %s778, %s791
          %s793 = smul.addr %s31, 128
          %s794 = scalar_lea.hbm %s8, %s793
          %s796 = sshll.u32 %s781, 4
          %s797 = int_to_ptr.vmem [resolvable:$true] %s796
          %799 = dma.vmem_to_hbm [thread:$0]  %s797, 128, %s794, %s778
        $region68: #{tpu_custom_call.1} parent=51 // pred_fallthru
          _
        // Predicated region
        $region69: #{tpu_custom_call.1} parent=51 // pred_check
          %p800 = pneg %p253
        $region70: #{tpu_custom_call.1} parent=51 // pred_check_branch
          %802 = sbr.rel (%p800) target = $region72
        $region71: #{tpu_custom_call.1} parent=51 // pred_region
          %s804 = ssub.s32 128, 128
          %805 = vsyncadd %s783, %s804
          %s806 = smul.addr %s31, 128
          %s807 = scalar_lea.hbm %s9, %s806
          %s809 = sshll.u32 %s786, 4
          %s810 = int_to_ptr.vmem [resolvable:$true] %s809
          %812 = dma.vmem_to_hbm [thread:$0]  %s810, 128, %s807, %s783
        $region72: #{tpu_custom_call.1} parent=51 // pred_fallthru
          _
      $region52: #{tpu_custom_call.1} parent=5 // pred_fallthru
        _
      %p813 = scmp.le.s32.totalorder 2, %s26
      // Predicated region
      $region73: #{tpu_custom_call.1} parent=5 // pred_check
        %p814 = pneg %p813
      $region74: #{tpu_custom_call.1} parent=5 // pred_check_branch
        %816 = sbr.rel (%p814) target = $region76
      $region75: #{tpu_custom_call.1} parent=5 // pred_region
        %s817 = ssub.s32 %s26, 2
        // Predicated region
        $region77: #{tpu_custom_call.1} parent=75 // pred_check
          %p818 = pneg %p233
        $region78: #{tpu_custom_call.1} parent=75 // pred_check_branch
          %820 = sbr.rel (%p818) target = $region80
        $region79: #{tpu_custom_call.1} parent=75 // pred_region
          %s821 = sand.u32 %s218, 1
          %s822 = scalar_lea.sflag [#allocation4], %s821
          %s823 = sand.u32 %s218, 1
          %s824 = smul.addr %s823, 8
          %s825 = scalar_lea.vmem [#allocation8], %s824
          %826 = dma.done %s822, 128
        $region80: #{tpu_custom_call.1} parent=75 // pred_fallthru
          _
        // Predicated region
        $region81: #{tpu_custom_call.1} parent=75 // pred_check
          %p827 = pneg %p259
        $region82: #{tpu_custom_call.1} parent=75 // pred_check_branch
          %829 = sbr.rel (%p827) target = $region84
        $region83: #{tpu_custom_call.1} parent=75 // pred_region
          %s830 = sand.u32 %s244, 1
          %s831 = scalar_lea.sflag [#allocation10], %s830
          %s832 = sand.u32 %s244, 1
          %s833 = smul.addr %s832, 8
          %s834 = scalar_lea.vmem [#allocation9], %s833
          %835 = dma.done %s831, 128
        $region84: #{tpu_custom_call.1} parent=75 // pred_fallthru
          _
      $region76: #{tpu_custom_call.1} parent=5 // pred_fallthru
        _
    $region6: #{tpu_custom_call.1} parent=1 // loop_footer
      %s30 = sadd.s32 1, %s26
    $region7: #{tpu_custom_call.1} parent=1 // loop_footer_branch
      %25 = sbr.rel target = $region3
    $region8: #{tpu_custom_call.1} parent=1 // loop_exit
      _
    %836 = vsyncpa [#allocation3], 1
    %s837 = scalar_lea.sflag [#allocation3], 1
    %838 = vsyncpa %s837, 1
    %839 = vsyncpa [#allocation6], 1
    %840 = vsyncpa [#allocation4], 1
    %s841 = scalar_lea.sflag [#allocation4], 1
    %842 = vsyncpa %s841, 1
    %843 = vsyncpa [#allocation10], 1
    %s844 = scalar_lea.sflag [#allocation10], 1
    %845 = vsyncpa %s844, 1

</llo_original>
